<compile_context>
chip_gen: v5e
topology: v5e:2x2
jax: 0.10.0
libtpu: 0.0.40
codegen_flags: <defaults>
</compile_context>

<pallas_src>
import functools

import jax
import jax.numpy as jnp
from jax import lax
from jax.experimental import pallas as pl
from jax.experimental.pallas import tpu as pltpu


def _round_up(x, m):
    return (x + m - 1) // m * m


# ----------------------------------------------------------------------------
# Row-tiled linear:  y = x @ w_t + b   (w_t already [Cin, Cout], compute dtype)
# ----------------------------------------------------------------------------
def _linear_kernel(x_ref, w_ref, b_ref, o_ref, *, compute_dtype):
    x = x_ref[...].astype(compute_dtype)
    w = w_ref[...]                                  # already compute_dtype
    acc = jnp.dot(x, w, preferred_element_type=jnp.float32)
    o_ref[...] = (acc + b_ref[...]).astype(o_ref.dtype)


def pallas_linear(x2d, w_t, b, out_dtype=None, *,
                  compute_dtype=jnp.bfloat16, max_tile_r=512):
    R, Cin = x2d.shape
    Cout = w_t.shape[1]
    out_dtype = out_dtype if out_dtype is not None else x2d.dtype

    tile_r = min(max_tile_r, _round_up(R, 8))
    Rp = _round_up(R, tile_r)
    if Rp != R:
        x2d = jnp.pad(x2d, ((0, Rp - R), (0, 0)))
    b2d = b.reshape(1, Cout)

    y = pl.pallas_call(
        functools.partial(_linear_kernel, compute_dtype=compute_dtype),
        out_shape=jax.ShapeDtypeStruct((Rp, Cout), out_dtype),
        grid=(Rp // tile_r,),
        in_specs=[
            pl.BlockSpec((tile_r, Cin), lambda i: (i, 0)),
            pl.BlockSpec((Cin, Cout), lambda i: (0, 0)),   # weight resident
            pl.BlockSpec((1, Cout), lambda i: (0, 0)),
        ],
        out_specs=pl.BlockSpec((tile_r, Cout), lambda i: (i, 0)),
        compiler_params=pltpu.CompilerParams(
            dimension_semantics=("parallel",),
            vmem_limit_bytes=48 * 1024 * 1024),
    )(x2d, w_t, b2d)
    return y[:R] if Rp != R else y


# ----------------------------------------------------------------------------
# Flash-style cross-attention with fused output projection.
# q:[B,Np,dim]  k,v:[B,Mp,dim]  wp_t:[dim,dim]  bp:[1,dim]  ->  [B,Np,dim]
# ----------------------------------------------------------------------------
def _flash_attn_proj_kernel(q_ref, k_ref, v_ref, wp_ref, bp_ref, o_ref,
                            acc_ref, m_ref, l_ref, *,
                            num_heads, head_dim, kv_len, tile_m,
                            compute_dtype):
    j = pl.program_id(2)

    @pl.when(j == 0)
    def _():
        m_ref[...] = jnp.full_like(m_ref, -jnp.inf)
        l_ref[...] = jnp.zeros_like(l_ref)
        acc_ref[...] = jnp.zeros_like(acc_ref)

    q = q_ref[0]                                   # [tile_n, dim]  compute dtype
    k = k_ref[0]                                   # [tile_m, dim]
    v = v_ref[0]

    need_mask = (kv_len % tile_m) != 0             # static (Python) condition
    if need_mask:
        col = j * tile_m + lax.broadcasted_iota(jnp.int32, (1, tile_m), 1)
        col_valid = col < kv_len                   # [1, tile_m]

    for h in range(num_heads):                     # static head loop
        hs = slice(h * head_dim, (h + 1) * head_dim)
        q_h = q[:, hs]
        k_h = k[:, hs]
        v_h = v[:, hs]

        # s = q_h @ k_h^T without materializing a transpose of k.
        s = lax.dot_general(q_h, k_h, (((1,), (1,)), ((), ())),
                            preferred_element_type=jnp.float32)   # [tn, tm]
        if need_mask:
            s = jnp.where(col_valid, s, -jnp.inf)

        m_prev = m_ref[:, h:h + 1]
        m_new = jnp.maximum(m_prev, jnp.max(s, axis=-1, keepdims=True))
        alpha = jnp.exp(m_prev - m_new)
        p = jnp.exp(s - m_new)                                     # f32

        l_ref[:, h:h + 1] = alpha * l_ref[:, h:h + 1] + \
            jnp.sum(p, axis=-1, keepdims=True)
        pv = jnp.dot(p.astype(compute_dtype), v_h,
                     preferred_element_type=jnp.float32)           # [tn, Dh]
        acc_ref[:, hs] = alpha * acc_ref[:, hs] + pv
        m_ref[:, h:h + 1] = m_new

    @pl.when(j == pl.num_programs(2) - 1)
    def _():
        # Normalize the small [tile_n, dim] accumulator (EUP reciprocal),
        # then fuse the output projection (wp resident in VMEM).
        for h in range(num_heads):
            hs = slice(h * head_dim, (h + 1) * head_dim)
            inv = pl.reciprocal(l_ref[:, h:h + 1], approx=True)
            acc_ref[:, hs] = acc_ref[:, hs] * inv
        x = acc_ref[...].astype(compute_dtype)                      # [tn, dim]
        out = jnp.dot(x, wp_ref[...], preferred_element_type=jnp.float32)
        out = out + bp_ref[...]
        o_ref[0] = out.astype(o_ref.dtype)          # lane-dense [tn, dim] store


def pallas_cross_attention(qp, kp, vp, wp_t, bp, out_dtype, *,
                           num_heads, compute_dtype=jnp.bfloat16,
                           max_tile_n=256, max_tile_m=512):
    B, N, dim = qp.shape
    M = kp.shape[1]
    head_dim = dim // num_heads

    tile_n = min(max_tile_n, _round_up(N, 8))
    tile_m = min(max_tile_m, _round_up(M, 8))
    Np = _round_up(N, tile_n)
    Mp = _round_up(M, tile_m)
    if Np != N:
        qp = jnp.pad(qp, ((0, 0), (0, Np - N), (0, 0)))
    if Mp != M:
        kp = jnp.pad(kp, ((0, 0), (0, Mp - M), (0, 0)))
        vp = jnp.pad(vp, ((0, 0), (0, Mp - M), (0, 0)))

    kern = functools.partial(
        _flash_attn_proj_kernel, num_heads=num_heads, head_dim=head_dim,
        kv_len=M, tile_m=tile_m, compute_dtype=compute_dtype)

    out = pl.pallas_call(
        kern,
        out_shape=jax.ShapeDtypeStruct((B, Np, dim), out_dtype),
        grid=(B, Np // tile_n, Mp // tile_m),
        in_specs=[
            pl.BlockSpec((1, tile_n, dim), lambda b, i, j: (b, i, 0)),
            pl.BlockSpec((1, tile_m, dim), lambda b, i, j: (b, j, 0)),
            pl.BlockSpec((1, tile_m, dim), lambda b, i, j: (b, j, 0)),
            pl.BlockSpec((dim, dim), lambda b, i, j: (0, 0)),   # wp resident
            pl.BlockSpec((1, dim), lambda b, i, j: (0, 0)),
        ],
        out_specs=pl.BlockSpec((1, tile_n, dim), lambda b, i, j: (b, i, 0)),
        scratch_shapes=[
            pltpu.VMEM((tile_n, dim), jnp.float32),        # acc
            pltpu.VMEM((tile_n, num_heads), jnp.float32),  # m
            pltpu.VMEM((tile_n, num_heads), jnp.float32),  # l
        ],
        compiler_params=pltpu.CompilerParams(
            dimension_semantics=("parallel", "parallel", "arbitrary"),
            vmem_limit_bytes=48 * 1024 * 1024),
    )(qp, kp, vp, wp_t, bp.reshape(1, dim))
    return out[:, :N, :] if Np != N else out


# ----------------------------------------------------------------------------
# Module wrapper
# ----------------------------------------------------------------------------
class MemEffCrossAttentionPallas:
    def __init__(self, dim, dim_q, dim_k, dim_v, num_heads=8,
                 qkv_bias=False, proj_bias=True, seed=0,
                 compute_dtype=jnp.bfloat16):
        assert dim % num_heads == 0
        self.dim = dim
        self.num_heads = num_heads
        self.head_dim = dim // num_heads
        self.compute_dtype = compute_dtype
        self.scale = self.head_dim ** (-0.5)          # module's explicit pre-scale

        key = jax.random.PRNGKey(seed)
        ks = jax.random.split(key, 8)

        def linear_init(kw, kb, fan_in, fan_out, use_bias):
            # torch.nn.Linear default: U(-1/sqrt(fan_in), 1/sqrt(fan_in))
            bound = fan_in ** (-0.5)
            w = jax.random.uniform(kw, (fan_out, fan_in), jnp.float32, -bound, bound)
            if use_bias:
                b = jax.random.uniform(kb, (fan_out,), jnp.float32, -bound, bound)
            else:
                b = jnp.zeros((fan_out,), jnp.float32)
            return w, b

        self.wq, self.bq = linear_init(ks[0], ks[1], dim_q, dim, qkv_bias)
        self.wk, self.bk = linear_init(ks[2], ks[3], dim_k, dim, qkv_bias)
        self.wv, self.bv = linear_init(ks[4], ks[5], dim_v, dim, qkv_bias)
        self.wp, self.bp = linear_init(ks[6], ks[7], dim, dim, proj_bias)

        # Fold BOTH scalings (module pre-scale and xformers' internal
        # head_dim**-0.5) into the q projection -- zero runtime cost.
        total_q_scale = self.scale * self.head_dim ** (-0.5)
        # Pre-transpose + pre-cast weights once at init (no per-call passes).
        self.wq_t = (self.wq.T * total_q_scale).astype(compute_dtype)
        self.bq_s = self.bq * total_q_scale
        self.wk_t = self.wk.T.astype(compute_dtype)
        self.wv_t = self.wv.T.astype(compute_dtype)
        self.wp_t = self.wp.T.astype(compute_dtype)

    def __call__(self, q, k, v, attn_bias=None):
        # TODO(synk): attn_bias (additive attention mask) not implemented; module default is None.
        assert attn_bias is None
        B, N, _ = q.shape
        M = k.shape[1]
        cdt = self.compute_dtype

        # q/k/v projections emit bf16 directly (halves HBM traffic downstream).
        qp = pallas_linear(q.reshape(B * N, -1), self.wq_t, self.bq_s,
                           out_dtype=cdt, compute_dtype=cdt).reshape(B, N, self.dim)
        kp = pallas_linear(k.reshape(B * M, -1), self.wk_t, self.bk,
                           out_dtype=cdt, compute_dtype=cdt).reshape(B, M, self.dim)
        vp = pallas_linear(v.reshape(B * M, -1), self.wv_t, self.bv,
                           out_dtype=cdt, compute_dtype=cdt).reshape(B, M, self.dim)

        # Flash attention + fused output projection, lane-dense [.., dim] layout.
        return pallas_cross_attention(qp, kp, vp, self.wp_t, self.bp,
                                      out_dtype=q.dtype,
                                      num_heads=self.num_heads,
                                      compute_dtype=cdt)

    # pure-JAX f32 reference (module semantics) for correctness checking
    def reference(self, q, k, v):
        B, N, _ = q.shape
        M = k.shape[1]
        H, Dh = self.num_heads, self.head_dim
        qp = self.scale * (q @ self.wq.T + self.bq)
        kp = k @ self.wk.T + self.bk
        vp = v @ self.wv.T + self.bv
        qh = qp.reshape(B, N, H, Dh).transpose(0, 2, 1, 3)
        kh = kp.reshape(B, M, H, Dh).transpose(0, 2, 1, 3)
        vh = vp.reshape(B, M, H, Dh).transpose(0, 2, 1, 3)
        s = jnp.einsum("bhnd,bhmd->bhnm", qh, kh) * (Dh ** -0.5)
        p = jax.nn.softmax(s, axis=-1)
        xh = jnp.einsum("bhnm,bhmd->bhnd", p, vh)
        x = xh.transpose(0, 2, 1, 3).reshape(B, N, -1)
        return x @ self.wp.T + self.bp


# ----------------------------------------------------------------------------
if __name__ == "__main__":
    B, N, M = 2, 8, 16
    dim, dim_q, dim_k, dim_v = 128, 64, 96, 96
    num_heads = 8

    key = jax.random.PRNGKey(0)
    kq, kk, kv = jax.random.split(key, 3)
    q = jax.random.normal(kq, (B, N, dim_q), jnp.float32)
    k = jax.random.normal(kk, (B, M, dim_k), jnp.float32)
    v = jax.random.normal(kv, (B, M, dim_v), jnp.float32)

    mod = MemEffCrossAttentionPallas(dim, dim_q, dim_k, dim_v,
                                     num_heads=num_heads, seed=0)

    out = jax.block_until_ready(mod(q, k, v))
    ref = mod.reference(q, k, v)

    assert out.shape == (B, N, dim)
    # bf16 MXU operands (f32 accumulation) -> loosened tolerance vs f32 reference
    assert jnp.allclose(out, ref, atol=3e-2, rtol=3e-2), \
        float(jnp.max(jnp.abs(out - ref)))

    print("KERNEL_OK")
</pallas_src>

<mosaic_0001>
module attributes {stable_mosaic.version = 11 : i64} {
  func.func @_linear_kernel(%arg0: i32, %arg1: memref<16x64xf32, #tpu.memory_space<vmem>>, %arg2: memref<64x128xbf16, #tpu.memory_space<vmem>>, %arg3: memref<1x128xf32, #tpu.memory_space<vmem>>, %arg4: memref<16x128xbf16, #tpu.memory_space<vmem>>) attributes {dimension_semantics = [#tpu.dimension_semantics<parallel>], iteration_bounds = array<i64: 1>, scalar_prefetch = 0 : i64, scratch_operands = 0 : i64, tpu.core_type = #tpu.core_type<tc>, window_params = [{transform_indices = @transform_0, window_bounds = array<i64: 16, 64>}, {pipeline_mode = #tpu.pipeline_mode<synchronous>, transform_indices = @transform_1, window_bounds = array<i64: 64, 128>}, {pipeline_mode = #tpu.pipeline_mode<synchronous>, transform_indices = @transform_2, window_bounds = array<i64: 1, 128>}, {transform_indices = @transform_3, window_bounds = array<i64: 16, 128>}]} {
    %c0 = arith.constant 0 : index
    %c0_0 = arith.constant 0 : index
    %0 = vector.load %arg1[%c0, %c0_0] : memref<16x64xf32, #tpu.memory_space<vmem>>, vector<16x64xf32>
    %1 = arith.truncf %0 : vector<16x64xf32> to vector<16x64xbf16>
    %c0_1 = arith.constant 0 : index
    %c0_2 = arith.constant 0 : index
    %2 = vector.load %arg2[%c0_1, %c0_2] : memref<64x128xbf16, #tpu.memory_space<vmem>>, vector<64x128xbf16>
    %cst = arith.constant dense<0.000000e+00> : vector<16x128xf32>
    %3 = tpu.matmul %1, %2, %cst {dimension_numbers = #tpu.dot_dimension_numbers<[1], [0], [0], [1], [0, 0, 1, 1], [], []>} : vector<16x64xbf16>, vector<64x128xbf16>, vector<16x128xf32> -> vector<16x128xf32>
    %c0_3 = arith.constant 0 : index
    %c0_4 = arith.constant 0 : index
    %4 = vector.load %arg3[%c0_3, %c0_4] : memref<1x128xf32, #tpu.memory_space<vmem>>, vector<1x128xf32>
    %5 = vector.broadcast %4 : vector<1x128xf32> to vector<16x128xf32>
    %6 = arith.addf %3, %5 : vector<16x128xf32>
    %7 = arith.truncf %6 : vector<16x128xf32> to vector<16x128xbf16>
    %c0_5 = arith.constant 0 : index
    %c0_6 = arith.constant 0 : index
    %8 = vector.load %arg4[%c0_5, %c0_6] : memref<16x128xbf16, #tpu.memory_space<vmem>>, vector<16x128xbf16>
    tpu.vector_store %arg4[%c0_5, %c0_6], %7 {strides = array<i32>} : memref<16x128xbf16, #tpu.memory_space<vmem>>, vector<16x128xbf16>,
    return
  }
  func.func @transform_0(%arg0: i32) -> (i32, i32) {
    %c0_i32 = arith.constant 0 : i32
    %c0_i32_0 = arith.constant 0 : i32
    return %arg0, %c0_i32 : i32, i32
  }
  func.func @transform_1(%arg0: i32) -> (i32, i32) {
    %c0_i32 = arith.constant 0 : i32
    %c0_i32_0 = arith.constant 0 : i32
    %c0_i32_1 = arith.constant 0 : i32
    return %c0_i32, %c0_i32_0 : i32, i32
  }
  func.func @transform_2(%arg0: i32) -> (i32, i32) {
    %c0_i32 = arith.constant 0 : i32
    %c0_i32_0 = arith.constant 0 : i32
    %c0_i32_1 = arith.constant 0 : i32
    return %c0_i32, %c0_i32_0 : i32, i32
  }
  func.func @transform_3(%arg0: i32) -> (i32, i32) {
    %c0_i32 = arith.constant 0 : i32
    %c0_i32_0 = arith.constant 0 : i32
    return %arg0, %c0_i32 : i32, i32
  }
}

</mosaic_0001>

<llo_original>
// kernel: tpu_custom_call.1
$region0: #{tpu_custom_call.1}
  #allocation0 [shape = 'u32[]', space=smem, size = 0x4, offset = 0x4, fixed_abs, tag = 'smem constant byte address 0x4 - core index']
  #allocation1 [shape = 'u32[72,128]{1,0:T(1,128)}', space=vmem, size = 0x9000, scoped, tag = 'internal scratch']
  %s0 = inlined_call_operand.hbm [shape: f32[16,64], index: 0, kind: input, shape index: {}]
  %s1 = inlined_call_operand.hbm [shape: bf16[64,128], index: 1, kind: input, shape index: {}]
  %s2 = inlined_call_operand.vmem [shape: f32[1,128], index: 2, kind: input, shape index: {}]
  %s3 = inlined_call_operand.hbm [shape: bf16[16,128], index: 3, kind: output, shape index: {}]
  %s4 = sld [smem:[#allocation0]]
  $region30: #{tpu_custom_call.1} parent=0
    _
  %s6 = ssub.s32 1, %s4
  %s7 = scalar_select 0, %s6, %s4
  $region1: #{tpu_custom_call.1} parent=0
    #allocation2 [shape = 'u8[8192]{0}', space=vmem, size = 0x2000, scoped, tag = 'input window, operand 0, single buffered']
    #allocation3 [shape = 's32[1]{0}', space=sflag, size = 0x4, scoped, tag = 'scoped memory for tpu_custom_call.1']
    #allocation4 [shape = 's32[1]{0}', space=sflag, size = 0x4, scoped, tag = 'scoped memory for tpu_custom_call.1']
    #allocation5 [shape = 'u8[16384]{0}', space=vmem, size = 0x4000, scoped, tag = 'input window, operand 1, single buffered']
    #allocation6 [shape = 's32[1]{0}', space=sflag, size = 0x4, scoped, tag = 'scoped memory for tpu_custom_call.1']
    #allocation7 [shape = 'u8[4096]{0}', space=vmem, size = 0x1000, scoped, tag = 'output window, operand 0, single buffered']
    %8 = vsyncpa [#allocation3], 0
    %9 = vsyncpa [#allocation6], 0
    %10 = vsyncpa [#allocation4], 0
    // Predicated region
    $region2: #{tpu_custom_call.1} parent=1 // pred_check
      _
    $region3: #{tpu_custom_call.1} parent=1 // pred_check_branch
      %12 = sbr.rel (0) target = $region5
    $region4: #{tpu_custom_call.1} parent=1 // pred_region
      %14 = vsyncadd [#allocation3], 0
      %s15 = sshll.u32 %s0, 4
      %s16 = int_to_ptr.hbm [resolvable:$true] %s15
      %s17 = sshll.u32 [#allocation2], 4
      %s18 = int_to_ptr.vmem [resolvable:$true] %s17
      %23 = dma.hbm_to_vmem [thread:$0]  %s16, 256, %s18, [#allocation3], 128, 128, 8
    $region5: #{tpu_custom_call.1} parent=1 // pred_fallthru
      _
    // Predicated region
    $region6: #{tpu_custom_call.1} parent=1 // pred_check
      _
    $region7: #{tpu_custom_call.1} parent=1 // pred_check_branch
      %25 = sbr.rel (0) target = $region9
    $region8: #{tpu_custom_call.1} parent=1 // pred_region
      %27 = vsyncadd [#allocation6], 0
      %s28 = sshll.u32 %s1, 4
      %s29 = int_to_ptr.hbm [resolvable:$true] %s28
      %s30 = sshll.u32 [#allocation5], 4
      %s31 = int_to_ptr.vmem [resolvable:$true] %s30
      %36 = dma.hbm_to_vmem [thread:$0]  %s29, 512, %s31, [#allocation6], 64, 64, 4
    $region9: #{tpu_custom_call.1} parent=1 // pred_fallthru
      _
    // Predicated region
    $region10: #{tpu_custom_call.1} parent=1 // pred_check
      _
    $region11: #{tpu_custom_call.1} parent=1 // pred_check_branch
      %38 = sbr.rel (0) target = $region13
    $region12: #{tpu_custom_call.1} parent=1 // pred_region
      _
    $region13: #{tpu_custom_call.1} parent=1 // pred_fallthru
      _
    // Predicated region
    $region14: #{tpu_custom_call.1} parent=1 // pred_check
      _
    $region15: #{tpu_custom_call.1} parent=1 // pred_check_branch
      %40 = sbr.rel (0) target = $region17
    $region16: #{tpu_custom_call.1} parent=1 // pred_region
      %42 = dma.done [#allocation3], 256
    $region17: #{tpu_custom_call.1} parent=1 // pred_fallthru
      _
    // Predicated region
    $region18: #{tpu_custom_call.1} parent=1 // pred_check
      _
    $region19: #{tpu_custom_call.1} parent=1 // pred_check_branch
      %44 = sbr.rel (0) target = $region21
    $region20: #{tpu_custom_call.1} parent=1 // pred_region
      %46 = dma.done [#allocation6], 512
    $region21: #{tpu_custom_call.1} parent=1 // pred_fallthru
      _
    %v48 = vld [vmem:[#allocation2] sm:$0xff]
    %v49 = vld [vmem:[#allocation2 + $0x8] sm:$0xff]
    %v50 = vpack.c.bf16 %v49, %v48
    %v51 = vld [vmem:[#allocation5] sm:$0xf]
    %v52 = vld [vmem:[#allocation5 + $0x4] sm:$0xf]
    %v53 = vld [vmem:[#allocation5 + $0x8] sm:$0xf]
    %v54 = vld [vmem:[#allocation5 + $0xc] sm:$0xf]
    %v55 = vld [vmem:[#allocation5 + $0x10] sm:$0xf]
    %v56 = vld [vmem:[#allocation5 + $0x14] sm:$0xf]
    %v57 = vld [vmem:[#allocation5 + $0x18] sm:$0xf]
    %v58 = vld [vmem:[#allocation5 + $0x1c] sm:$0xf]
    %v59 = vld [vmem:[%s2] sm:$0x1]
    %v61 = vperm.slane %v59, 0
    %v71 = vunpack.c.l.b16 %v51
    %v72 = vunpack.c.l.b16 %v52
    %v73 = vunpack.c.l.b16 %v53
    %v74 = vunpack.c.l.b16 %v54
    %v75 = vunpack.c.l.b16 %v55
    %v76 = vunpack.c.l.b16 %v56
    %v77 = vunpack.c.l.b16 %v57
    %v78 = vunpack.c.l.b16 %v58
    %v79 = vpack.c.b16 %v72, %v71
    %v80 = vpack.c.b16 %v74, %v73
    %v81 = vpack.c.b16 %v76, %v75
    %v82 = vpack.c.b16 %v78, %v77
    %vm87 = vcmask 523264
    %v89 = vsel %vm87, %v50, 0
    %91 = vmatpush.bf16.msra.mxu0 0
    %92 = vmatpush.bf16.msra.mxu0 0
    %93 = vmatpush.bf16.msra.mxu0 0
    %94 = vmatpush.bf16.msra.mxu0 0
    %95 = vmatpush.bf16.msra.mxu0 %v82
    %96 = vmatpush.bf16.msra.mxu0 %v81
    %97 = vmatpush.bf16.msra.mxu0 %v80
    %98 = vmatpush.bf16.msra.mxu0 %v79
    %99 = vmatmul.bf16.gmra.mxu0 %v89
    %v100 = vpop.f32.mrf.mxu0
    %v101 = vadd.f32 %v61, %v100
    %v102 = vpop.f32.mrf.mxu0
    %v103 = vadd.f32 %v61, %v102
    %104 = vdwg.mxu0
    %v105 = vpack.c.bf16 %v101, %v101
    %v106 = vpack.c.bf16 %v103, %v103
    %107 = vst [vmem:[#allocation7] sm:$0xf] %v105
    %108 = vst [vmem:[#allocation7 + $0x4] sm:$0xf] %v106
    // Predicated region
    $region22: #{tpu_custom_call.1} parent=1 // pred_check
      _
    $region23: #{tpu_custom_call.1} parent=1 // pred_check_branch
      %110 = sbr.rel (0) target = $region25
    $region24: #{tpu_custom_call.1} parent=1 // pred_region
      %112 = vsyncadd [#allocation4], 0
      %s113 = sshll.u32 [#allocation7], 4
      %s114 = int_to_ptr.vmem [resolvable:$true] %s113
      %s115 = sshll.u32 %s3, 4
      %s116 = int_to_ptr.hbm [resolvable:$true] %s115
      %121 = dma.vmem_to_hbm [thread:$0]  %s114, 128, %s116, [#allocation4], 64, 64, 4
    $region25: #{tpu_custom_call.1} parent=1 // pred_fallthru
      _
    // Predicated region
    $region26: #{tpu_custom_call.1} parent=1 // pred_check
      _
    $region27: #{tpu_custom_call.1} parent=1 // pred_check_branch
      %123 = sbr.rel (0) target = $region29
    $region28: #{tpu_custom_call.1} parent=1 // pred_region
      %125 = dma.done [#allocation4], 128
    $region29: #{tpu_custom_call.1} parent=1 // pred_fallthru
      _
    %126 = vsyncpa [#allocation3], 1
    %127 = vsyncpa [#allocation6], 1
    %128 = vsyncpa [#allocation4], 1

</llo_original>
